<compile_context>
chip_gen: v6e
topology: v6e:2x2x1
jax: 0.10.0
libtpu: 0.0.40
codegen_flags: <defaults>
</compile_context>

<pallas_src>
import jax
import jax.numpy as jnp
from jax import lax
from jax.experimental import pallas as pl
from jax.experimental.pallas import tpu as pltpu


def ranker_head_kernel(x_ref, w1_ref, b1_ref, w2_ref, b2_ref, o_ref):
    # x_ref : (tm, D) f32   w1_ref: (D, D) bf16 (PyTorch (out, in) layout)
    # b1_ref: (1, D) f32    w2_ref: (1, D) f32   b2_ref: (1,) f32 in SMEM
    # o_ref : (tm, 1)
    x = x_ref[...].astype(jnp.bfloat16)                      # activation cast on VPU

    # dense: x @ W_dense.T  (contract last dims of both; bf16 MXU, f32 accum).
    h = lax.dot_general(
        x, w1_ref[...],
        dimension_numbers=(((1,), (1,)), ((), ())),
        preferred_element_type=jnp.float32)                  # (tm, D) f32
    h = jnp.tanh(h + b1_ref[...])

    # out_proj (D -> 1): lane-wise multiply + cross-lane reduce (VPU + XLU),
    # keeping the MXU free; bias scalar comes from SMEM.
    out = jnp.sum(h * w2_ref[...], axis=-1, keepdims=True) + b2_ref[0]
    o_ref[...] = out.astype(o_ref.dtype)


def _round_up(x, m):
    return (x + m - 1) // m * m


def roberta_ranker_head(features, w_dense, b_dense, w_out, b_out, *, tile_m=512):
    """features: (B, C, L, D) float32.  Weights in PyTorch nn.Linear layout:
    w_dense (D, D), b_dense (D,), w_out (1, D), b_out (1,).  Returns (B, C, 1)."""
    B, C, L, D = features.shape
    M = B * C

    tm = _round_up(min(tile_m, _round_up(M, 8)), 8)
    grid_m = pl.cdiv(M, tm)

    if D % 128 == 0 or L == 1:
        # Fused CLS gather: (M, L*D) row-major view; the (tm, D) block at column
        # block 0 reads exactly columns [0, D) == the L=0 (CLS) token per row.
        x_in = features.reshape(M, L * D)
    else:
        # TODO(synk): lane-unaligned D (not a multiple of 128) cannot be gathered
        # via BlockSpec columns; fall back to a wrapper-side slice.
        x_in = features[:, :, 0, :].reshape(M, D)

    # Weight prep (in production, pre-cast / reshape once at weight-load time).
    w1 = w_dense.astype(jnp.bfloat16)                 # (D, D), PyTorch layout
    b1 = b_dense.reshape(1, D).astype(jnp.float32)    # (1, D)
    w2 = w_out.reshape(1, D).astype(jnp.float32)      # (1, D) lane-dense row
    b2 = b_out.reshape(1).astype(jnp.float32)         # (1,) SMEM scalar

    # NOTE: dropout is identity at inference time (eval mode), so no RNG needed.
    out = pl.pallas_call(
        ranker_head_kernel,
        out_shape=jax.ShapeDtypeStruct((M, 1), features.dtype),
        grid=(grid_m,),
        in_specs=[
            pl.BlockSpec((tm, D), lambda i: (i, 0)),               # x tile (CLS rows)
            pl.BlockSpec((D, D), lambda i: (0, 0)),                # w_dense (resident)
            pl.BlockSpec((1, D), lambda i: (0, 0)),                # b_dense
            pl.BlockSpec((1, D), lambda i: (0, 0)),                # w_out row
            pl.BlockSpec(memory_space=pltpu.MemorySpace.SMEM),     # b_out scalar
        ],
        out_specs=pl.BlockSpec((tm, 1), lambda i: (i, 0)),
        compiler_params=pltpu.CompilerParams(
            dimension_semantics=("parallel",)),
    )(x_in, w1, b1, w2, b2)

    return out.reshape(B, C, 1)


if __name__ == "__main__":
    # Small shapes consistent with the module; hidden=128 keeps the lane axis
    # aligned (review item: pad/choose D multiple of 128).  M = B*C = 24 with
    # tile_m=8 exercises a 3-step pipelined grid.
    B, C, L, D = 2, 12, 8, 128

    key = jax.random.PRNGKey(0)
    k_feat, k_w1, k_b1, k_w2, k_b2 = jax.random.split(key, 5)

    features = jax.random.normal(k_feat, (B, C, L, D), dtype=jnp.float32)

    # PyTorch nn.Linear layout: weight is (out_features, in_features).
    w_dense = jax.random.normal(k_w1, (D, D), dtype=jnp.float32) * 0.05
    b_dense = jax.random.normal(k_b1, (D,), dtype=jnp.float32) * 0.05
    w_out = jax.random.normal(k_w2, (1, D), dtype=jnp.float32) * 0.05
    b_out = jax.random.normal(k_b2, (1,), dtype=jnp.float32) * 0.05

    out = roberta_ranker_head(features, w_dense, b_dense, w_out, b_out, tile_m=8)
    out = jax.block_until_ready(out)

    # Pure-JAX f32 reference (dropout = identity in eval mode).
    x_ref = features[:, :, 0, :]
    h_ref = jnp.tanh(jnp.einsum("bcd,ed->bce", x_ref, w_dense) + b_dense)
    ref = jnp.einsum("bcd,ed->bce", h_ref, w_out) + b_out

    assert out.shape == (B, C, 1), out.shape
    # bf16 MXU operands (f32 accumulation) -> loosened tolerance vs f32 reference.
    assert jnp.allclose(out, ref, atol=2e-2, rtol=2e-2), (
        float(jnp.max(jnp.abs(out - ref))))

    print("KERNEL_OK")
</pallas_src>

<mosaic_0001>
module attributes {stable_mosaic.version = 11 : i64} {
  func.func @ranker_head_kernel(%arg0: i32, %arg1: memref<8x128xf32, #tpu.memory_space<vmem>>, %arg2: memref<128x128xbf16, #tpu.memory_space<vmem>>, %arg3: memref<1x128xf32, #tpu.memory_space<vmem>>, %arg4: memref<1x128xf32, #tpu.memory_space<vmem>>, %arg5: memref<1xf32, #tpu.memory_space<smem>>, %arg6: memref<8x1xf32, #tpu.memory_space<vmem>>) attributes {dimension_semantics = [#tpu.dimension_semantics<parallel>], iteration_bounds = array<i64: 3>, scalar_prefetch = 0 : i64, scratch_operands = 0 : i64, tpu.core_type = #tpu.core_type<tc>, window_params = [{transform_indices = @transform_0, window_bounds = array<i64: 8, 128>}, {pipeline_mode = #tpu.pipeline_mode<synchronous>, transform_indices = @transform_1, window_bounds = array<i64: 128, 128>}, {pipeline_mode = #tpu.pipeline_mode<synchronous>, transform_indices = @transform_2, window_bounds = array<i64: 1, 128>}, {pipeline_mode = #tpu.pipeline_mode<synchronous>, transform_indices = @transform_3, window_bounds = array<i64: 1, 128>}, {transform_indices = @transform_4, window_bounds = array<i64: 1>}, {transform_indices = @transform_5, window_bounds = array<i64: 8, 1>}]} {
    %c0 = arith.constant 0 : index
    %c0_0 = arith.constant 0 : index
    %0 = vector.load %arg1[%c0, %c0_0] : memref<8x128xf32, #tpu.memory_space<vmem>>, vector<8x128xf32>
    %1 = arith.truncf %0 : vector<8x128xf32> to vector<8x128xbf16>
    %c0_1 = arith.constant 0 : index
    %c0_2 = arith.constant 0 : index
    %2 = vector.load %arg2[%c0_1, %c0_2] : memref<128x128xbf16, #tpu.memory_space<vmem>>, vector<128x128xbf16>
    %cst = arith.constant dense<0.000000e+00> : vector<8x128xf32>
    %3 = tpu.matmul %1, %2, %cst {dimension_numbers = #tpu.dot_dimension_numbers<[1], [1], [0], [0], [0, 0, 1, 0], [], []>} : vector<8x128xbf16>, vector<128x128xbf16>, vector<8x128xf32> -> vector<8x128xf32>
    %c0_3 = arith.constant 0 : index
    %c0_4 = arith.constant 0 : index
    %4 = vector.load %arg3[%c0_3, %c0_4] : memref<1x128xf32, #tpu.memory_space<vmem>>, vector<1x128xf32>
    %5 = vector.broadcast %4 : vector<1x128xf32> to vector<8x128xf32>
    %6 = arith.addf %3, %5 : vector<8x128xf32>
    %7 = math.tanh %6 : vector<8x128xf32>
    %c0_5 = arith.constant 0 : index
    %c0_6 = arith.constant 0 : index
    %8 = vector.load %arg4[%c0_5, %c0_6] : memref<1x128xf32, #tpu.memory_space<vmem>>, vector<1x128xf32>
    %9 = vector.broadcast %8 : vector<1x128xf32> to vector<8x128xf32>
    %10 = arith.mulf %7, %9 : vector<8x128xf32>
    %cst_7 = arith.constant dense<0.000000e+00> : vector<8xf32>
    %11 = vector.multi_reduction <add>, %10, %cst_7 [1] : vector<8x128xf32> to vector<8xf32>
    %12 = vector.shape_cast %11 : vector<8xf32> to vector<8x1xf32>
    %c0_8 = arith.constant 0 : index
    %13 = memref.load %arg5[%c0_8] : memref<1xf32, #tpu.memory_space<smem>>
    %14 = vector.broadcast %13 : f32 to vector<8x1xf32>
    %15 = arith.addf %12, %14 : vector<8x1xf32>
    %c0_9 = arith.constant 0 : index
    %c0_10 = arith.constant 0 : index
    %16 = vector.load %arg6[%c0_9, %c0_10] : memref<8x1xf32, #tpu.memory_space<vmem>>, vector<8x1xf32>
    tpu.vector_store %arg6[%c0_9, %c0_10], %15 {strides = array<i32>} : memref<8x1xf32, #tpu.memory_space<vmem>>, vector<8x1xf32>,
    return
  }
  func.func @transform_0(%arg0: i32) -> (i32, i32) {
    %c0_i32 = arith.constant 0 : i32
    %c0_i32_0 = arith.constant 0 : i32
    return %arg0, %c0_i32 : i32, i32
  }
  func.func @transform_1(%arg0: i32) -> (i32, i32) {
    %c0_i32 = arith.constant 0 : i32
    %c0_i32_0 = arith.constant 0 : i32
    %c0_i32_1 = arith.constant 0 : i32
    return %c0_i32, %c0_i32_0 : i32, i32
  }
  func.func @transform_2(%arg0: i32) -> (i32, i32) {
    %c0_i32 = arith.constant 0 : i32
    %c0_i32_0 = arith.constant 0 : i32
    %c0_i32_1 = arith.constant 0 : i32
    return %c0_i32, %c0_i32_0 : i32, i32
  }
  func.func @transform_3(%arg0: i32) -> (i32, i32) {
    %c0_i32 = arith.constant 0 : i32
    %c0_i32_0 = arith.constant 0 : i32
    %c0_i32_1 = arith.constant 0 : i32
    return %c0_i32, %c0_i32_0 : i32, i32
  }
  func.func @transform_4(%arg0: i32) -> i32 {
    %c0_i32 = arith.constant 0 : i32
    %c0_i32_0 = arith.constant 0 : i32
    return %c0_i32 : i32
  }
  func.func @transform_5(%arg0: i32) -> (i32, i32) {
    %c0_i32 = arith.constant 0 : i32
    %c0_i32_0 = arith.constant 0 : i32
    return %arg0, %c0_i32 : i32, i32
  }
}

</mosaic_0001>

<llo_original>
// kernel: tpu_custom_call.1
$region0: #{tpu_custom_call.1}
  #allocation0 [shape = 'u32[]', space=smem, size = 0x4, offset = 0x4, fixed_abs, tag = 'smem constant byte address 0x4 - core index']
  #allocation1 [shape = 'u32[144,128]{1,0:T(1,128)}', space=vmem, size = 0x12000, scoped, tag = 'internal scratch']
  #allocation2 [shape = 'f32[1]{0:T(128)S(6)}', space=smem, size = 0x200, scoped, tag = 'scoped memory for tpu_custom_call.1']
  %s0 = inlined_call_operand.hbm [shape: f32[24,1024], index: 0, kind: input, shape index: {}]
  %s1 = inlined_call_operand.hbm [shape: bf16[128,128], index: 1, kind: input, shape index: {}]
  %s2 = inlined_call_operand.vmem [shape: f32[1,128], index: 2, kind: input, shape index: {}]
  %s3 = inlined_call_operand.vmem [shape: f32[1,128], index: 3, kind: input, shape index: {}]
  %s4 = inlined_call_operand.<no memory space> [shape: f32[1], index: 4, kind: input, shape index: {}]
  %s5 = inlined_call_operand.vmem [shape: f32[24,1], index: 5, kind: output, shape index: {}]
  %s6 = sld [smem:[#allocation0]]
  $region61: #{tpu_custom_call.1} parent=0
    _
  %s8 = ssub.s32 1, %s6
  %s9 = scalar_select 0, %s8, %s6
  %10 = sst [smem:[#allocation2]] %s4
  $region1: #{tpu_custom_call.1} parent=0
    #allocation3 [shape = 'u8[8192]{0}', space=vmem, size = 0x2000, scoped, tag = 'input window, operand 0']
    #allocation4 [shape = 's32[2]{0}', space=sflag, size = 0x8, scoped, tag = 'scoped memory for tpu_custom_call.1']
    #allocation5 [shape = 'u8[32768]{0}', space=vmem, size = 0x8000, scoped, tag = 'input window, operand 1, single buffered']
    #allocation6 [shape = 's32[1]{0}', space=sflag, size = 0x4, scoped, tag = 'scoped memory for tpu_custom_call.1']
    %11 = vsyncpa [#allocation4], 0
    %s12 = scalar_lea.sflag [#allocation4], 1
    %13 = vsyncpa %s12, 0
    %14 = vsyncpa [#allocation6], 0
    loop: start=0, step=1, limit=5
    $region2: #{tpu_custom_call.1} parent=1 // loop_pre_header
      _
    $region3: #{tpu_custom_call.1} parent=1 // loop_header
      %s16 = sphi 0, %s20
      %p17 = scmp.ge.s32.totalorder %s16, 5
      %s26 = sphi 0, %s28
      %s29 = sphi 0, %s26
      %s30 = sphi 0, %s29
      %s46 = sphi 0, %s30
      %s50 = sphi 0, %s50
      %s52 = sphi 0, %s50
      %s53 = sphi 0, %s52
      %s67 = sphi 0, %s53
      %s71 = sphi 0, %s71
      %s73 = sphi 0, %s71
      %s74 = sphi 0, %s73
      %s88 = sphi 0, %s74
      %s92 = sphi 0, %s92
      %s94 = sphi 0, %s92
      %s95 = sphi 0, %s94
      %s109 = sphi 0, %s95
      %s113 = sphi 0, %s113
      %s115 = sphi 0, %s113
      %s116 = sphi 0, %s115
      %s130 = sphi 0, %s116
      %s136 = sphi 0, %s138
      %s139 = sphi 0, %s136
      %s140 = sphi 0, %s139
      %s156 = sphi 0, %s140
    $region4: #{tpu_custom_call.1} parent=1 // loop_header_branch
      %19 = sbr.rel (%p17) target = $region8
    $region5: #{tpu_custom_call.1} parent=1 // loop_body
      %s21 = ssub.s32 %s16, 1
      %s22 = ssub.s32 %s16, 2
      %s23 = sadd.s32 %s16, 1
      %s24 = ssub.s32 %s16, %s23
      %p25 = scmp.eq.s32.totalorder %s24, 0
      %s27 = sadd.s32 %s26, 1
      %s28 = scalar_select %p25, %s26, %s27
      %p31 = pneg %p25
      %p32 = scmp.eq.s32.totalorder %s16, 2
      %p33 = por %p31, %p32
      %p34 = scmp.ne.s32.totalorder %s26, %s29
      %p35 = scmp.eq.s32.totalorder %s16, 0
      %p36 = por %p34, %p35
      %p37 = scmp.ne.s32.totalorder %s26, %s29
      %p38 = scmp.eq.s32.totalorder %s21, 2
      %p39 = por %p37, %p38
      %p40 = scmp.ne.s32.totalorder %s29, %s30
      %p41 = scmp.eq.s32.totalorder %s21, 0
      %p42 = por %p40, %p41
      %p43 = scmp.ne.s32.totalorder %s29, %s30
      %p44 = scmp.eq.s32.totalorder %s22, 2
      %p45 = por %p43, %p44
      %p47 = scmp.ne.s32.totalorder %s30, %s46
      %p48 = scmp.eq.s32.totalorder %s22, 0
      %p49 = por %p47, %p48
      %s51 = sadd.s32 %s50, 1
      %p54 = scmp.eq.s32.totalorder %s16, 2
      %p55 = scmp.ne.s32.totalorder %s50, %s52
      %p56 = scmp.eq.s32.totalorder %s16, 0
      %p57 = por %p55, %p56
      %p58 = scmp.ne.s32.totalorder %s50, %s52
      %p59 = scmp.eq.s32.totalorder %s21, 2
      %p60 = por %p58, %p59
      %p61 = scmp.ne.s32.totalorder %s52, %s53
      %p62 = scmp.eq.s32.totalorder %s21, 0
      %p63 = por %p61, %p62
      %p64 = scmp.ne.s32.totalorder %s52, %s53
      %p65 = scmp.eq.s32.totalorder %s22, 2
      %p66 = por %p64, %p65
      %p68 = scmp.ne.s32.totalorder %s53, %s67
      %p69 = scmp.eq.s32.totalorder %s22, 0
      %p70 = por %p68, %p69
      %s72 = sadd.s32 %s71, 1
      %p75 = scmp.eq.s32.totalorder %s16, 2
      %p76 = scmp.ne.s32.totalorder %s71, %s73
      %p77 = scmp.eq.s32.totalorder %s16, 0
      %p78 = por %p76, %p77
      %p79 = scmp.ne.s32.totalorder %s71, %s73
      %p80 = scmp.eq.s32.totalorder %s21, 2
      %p81 = por %p79, %p80
      %p82 = scmp.ne.s32.totalorder %s73, %s74
      %p83 = scmp.eq.s32.totalorder %s21, 0
      %p84 = por %p82, %p83
      %p85 = scmp.ne.s32.totalorder %s73, %s74
      %p86 = scmp.eq.s32.totalorder %s22, 2
      %p87 = por %p85, %p86
      %p89 = scmp.ne.s32.totalorder %s74, %s88
      %p90 = scmp.eq.s32.totalorder %s22, 0
      %p91 = por %p89, %p90
      %s93 = sadd.s32 %s92, 1
      %p96 = scmp.eq.s32.totalorder %s16, 2
      %p97 = scmp.ne.s32.totalorder %s92, %s94
      %p98 = scmp.eq.s32.totalorder %s16, 0
      %p99 = por %p97, %p98
      %p100 = scmp.ne.s32.totalorder %s92, %s94
      %p101 = scmp.eq.s32.totalorder %s21, 2
      %p102 = por %p100, %p101
      %p103 = scmp.ne.s32.totalorder %s94, %s95
      %p104 = scmp.eq.s32.totalorder %s21, 0
      %p105 = por %p103, %p104
      %p106 = scmp.ne.s32.totalorder %s94, %s95
      %p107 = scmp.eq.s32.totalorder %s22, 2
      %p108 = por %p106, %p107
      %p110 = scmp.ne.s32.totalorder %s95, %s109
      %p111 = scmp.eq.s32.totalorder %s22, 0
      %p112 = por %p110, %p111
      %s114 = sadd.s32 %s113, 1
      %p117 = scmp.eq.s32.totalorder %s16, 2
      %p118 = scmp.ne.s32.totalorder %s113, %s115
      %p119 = scmp.eq.s32.totalorder %s16, 0
      %p120 = por %p118, %p119
      %p121 = scmp.ne.s32.totalorder %s113, %s115
      %p122 = scmp.eq.s32.totalorder %s21, 2
      %p123 = por %p121, %p122
      %p124 = scmp.ne.s32.totalorder %s115, %s116
      %p125 = scmp.eq.s32.totalorder %s21, 0
      %p126 = por %p124, %p125
      %p127 = scmp.ne.s32.totalorder %s115, %s116
      %p128 = scmp.eq.s32.totalorder %s22, 2
      %p129 = por %p127, %p128
      %p131 = scmp.ne.s32.totalorder %s116, %s130
      %p132 = scmp.eq.s32.totalorder %s22, 0
      %p133 = por %p131, %p132
      %s134 = ssub.s32 %s16, %s23
      %p135 = scmp.eq.s32.totalorder %s134, 0
      %s137 = sadd.s32 %s136, 1
      %s138 = scalar_select %p135, %s136, %s137
      %p141 = pneg %p135
      %p142 = scmp.eq.s32.totalorder %s16, 2
      %p143 = por %p141, %p142
      %p144 = scmp.ne.s32.totalorder %s136, %s139
      %p145 = scmp.eq.s32.totalorder %s16, 0
      %p146 = por %p144, %p145
      %p147 = scmp.ne.s32.totalorder %s136, %s139
      %p148 = scmp.eq.s32.totalorder %s21, 2
      %p149 = por %p147, %p148
      %p150 = scmp.ne.s32.totalorder %s139, %s140
      %p151 = scmp.eq.s32.totalorder %s21, 0
      %p152 = por %p150, %p151
      %p153 = scmp.ne.s32.totalorder %s139, %s140
      %p154 = scmp.eq.s32.totalorder %s22, 2
      %p155 = por %p153, %p154
      %p157 = scmp.ne.s32.totalorder %s140, %s156
      %p158 = scmp.eq.s32.totalorder %s22, 0
      %p159 = por %p157, %p158
      %p160 = scmp.le.s32.totalorder 1, %s16
      %p161 = scmp.lt.s32.totalorder %s16, 4
      %p162 = pnand %p160, %p161
      %p163 = pneg %p162
      // Predicated region
      $region9: #{tpu_custom_call.1} parent=5 // pred_check
        _
      $region10: #{tpu_custom_call.1} parent=5 // pred_check_branch
        %165 = sbr.rel (%p162) target = $region12
      $region11: #{tpu_custom_call.1} parent=5 // pred_region
        %s166 = ssub.s32 %s16, 1
        // Predicated region
        $region13: #{tpu_custom_call.1} parent=11 // pred_check
          %p167 = pneg %p63
        $region14: #{tpu_custom_call.1} parent=11 // pred_check_branch
          %169 = sbr.rel (%p167) target = $region16
        $region15: #{tpu_custom_call.1} parent=11 // pred_region
          %s171 = ssub.s32 1024, 1024
          %172 = vsyncadd [#allocation6], %s171
          %s173 = sshll.u32 [#allocation5], 4
          %s174 = int_to_ptr.vmem [resolvable:$true] %s173
          %179 = dma.hbm_to_vmem [thread:$0]  %s1, 1024, %s174, [#allocation6], 64, 64, 4
        $region16: #{tpu_custom_call.1} parent=11 // pred_fallthru
          _
        // Predicated region
        $region17: #{tpu_custom_call.1} parent=11 // pred_check
          %p180 = pneg %p84
        $region18: #{tpu_custom_call.1} parent=11 // pred_check_branch
          %182 = sbr.rel (%p180) target = $region20
        $region19: #{tpu_custom_call.1} parent=11 // pred_region
          _
        $region20: #{tpu_custom_call.1} parent=11 // pred_fallthru
          _
        // Predicated region
        $region21: #{tpu_custom_call.1} parent=11 // pred_check
          %p183 = pneg %p105
        $region22: #{tpu_custom_call.1} parent=11 // pred_check_branch
          %185 = sbr.rel (%p183) target = $region24
        $region23: #{tpu_custom_call.1} parent=11 // pred_region
          _
        $region24: #{tpu_custom_call.1} parent=11 // pred_fallthru
          _
        // Predicated region
        $region25: #{tpu_custom_call.1} parent=11 // pred_check
          %p186 = pneg %p126
        $region26: #{tpu_custom_call.1} parent=11 // pred_check_branch
          %188 = sbr.rel (%p186) target = $region28
        $region27: #{tpu_custom_call.1} parent=11 // pred_region
          _
        $region28: #{tpu_custom_call.1} parent=11 // pred_fallthru
          _
      $region12: #{tpu_custom_call.1} parent=5 // pred_fallthru
        _
      %p189 = scmp.lt.s32.totalorder %s16, 3
      // Predicated region
      $region29: #{tpu_custom_call.1} parent=5 // pred_check
        %p190 = pneg %p189
      $region30: #{tpu_custom_call.1} parent=5 // pred_check_branch
        %192 = sbr.rel (%p190) target = $region32
      $region31: #{tpu_custom_call.1} parent=5 // pred_region
        // Predicated region
        $region33: #{tpu_custom_call.1} parent=31 // pred_check
          %p193 = pneg %p36
        $region34: #{tpu_custom_call.1} parent=31 // pred_check_branch
          %195 = sbr.rel (%p193) target = $region36
        $region35: #{tpu_custom_call.1} parent=31 // pred_region
          %s196 = sand.u32 %s26, 1
          %s197 = scalar_lea.sflag [#allocation4], %s196
          %s198 = sand.u32 %s26, 1
          %s199 = smul.addr %s198, 8
          %s200 = scalar_lea.vmem [#allocation3], %s199
          %s202 = ssub.s32 128, 128
          %203 = vsyncadd %s197, %s202
          %s204 = smul.addr %s16, 8
          %s205 = smul.addr %s204, 128
          %s206 = scalar_lea.hbm %s0, %s205
          %s208 = sshll.u32 %s200, 4
          %s209 = int_to_ptr.vmem [resolvable:$true] %s208
          %211 = dma.hbm_to_vmem [thread:$0]  %s206, 128, %s209, %s197
        $region36: #{tpu_custom_call.1} parent=31 // pred_fallthru
          _
      $region32: #{tpu_custom_call.1} parent=5 // pred_fallthru
        _
      %p212 = scmp.le.s32.totalorder 1, %s16
      %p213 = scmp.lt.s32.totalorder %s16, 4
      %p214 = pnand %p212, %p213
      %p215 = pneg %p214
      // Predicated region
      $region37: #{tpu_custom_call.1} parent=5 // pred_check
        _
      $region38: #{tpu_custom_call.1} parent=5 // pred_check_branch
        %217 = sbr.rel (%p214) target = $region40
      $region39: #{tpu_custom_call.1} parent=5 // pred_region
        %s218 = ssub.s32 %s16, 1
        %s219 = sand.u32 %s29, 1
        %s220 = scalar_lea.sflag [#allocation4], %s219
        %s221 = sand.u32 %s29, 1
        %s222 = smul.addr %s221, 8
        %s223 = scalar_lea.vmem [#allocation3], %s222
        // Predicated region
        $region41: #{tpu_custom_call.1} parent=39 // pred_check
          %p224 = pneg %p42
        $region42: #{tpu_custom_call.1} parent=39 // pred_check_branch
          %226 = sbr.rel (%p224) target = $region44
        $region43: #{tpu_custom_call.1} parent=39 // pred_region
          %227 = dma.done %s220, 128
        $region44: #{tpu_custom_call.1} parent=39 // pred_fallthru
          _
        // Predicated region
        $region45: #{tpu_custom_call.1} parent=39 // pred_check
          %p228 = pneg %p63
        $region46: #{tpu_custom_call.1} parent=39 // pred_check_branch
          %230 = sbr.rel (%p228) target = $region48
        $region47: #{tpu_custom_call.1} parent=39 // pred_region
          %231 = dma.done [#allocation6], 1024
        $region48: #{tpu_custom_call.1} parent=39 // pred_fallthru
          _
        %s232 = sand.u32 %s29, 1
        %s233 = scalar_lea.sflag [#allocation4], %s232
        %s234 = sand.u32 %s29, 1
        %s235 = smul.addr %s234, 8
        %s236 = scalar_lea.vmem [#allocation3], %s235
        %p237 = pneg %p42
        %p238 = pneg %p39
        %p239 = pneg %p63
        %p240 = pneg %p60
        %p241 = pneg %p84
        %p242 = pneg %p81
        %p243 = pneg %p105
        %p244 = pneg %p102
        %p245 = pneg %p126
        %p246 = pneg %p123
        %p247 = pneg %p152
        %p248 = pneg %p149
        %p249 = scmp.lt.s32.totalorder %s21, 2
        %s250 = scalar_select %p249, %s21, 2
        %s251 = smul.addr %s250, 8
        %s252 = scalar_lea.vmem %s5, %s251
        %p253 = scmp.lt.s32.totalorder %s21, 2
        %s254 = scalar_select %p253, %s21, 2
        %s255 = smul.addr %s254, 8
        %s256 = scalar_lea.vmem %s5, %s255
        %v258 = vld [vmem:[%s223] sm:$0xff]
        %v259 = vpack.c.bf16 %v258, %v258
        %v260 = vld [vmem:[#allocation5] sm:$0xf]
        %v261 = vld [vmem:[#allocation5 + $0x4] sm:$0xf]
        %v262 = vld [vmem:[#allocation5 + $0x8] sm:$0xf]
        %v263 = vld [vmem:[#allocation5 + $0xc] sm:$0xf]
        %v264 = vld [vmem:[#allocation5 + $0x10] sm:$0xf]
        %v265 = vld [vmem:[#allocation5 + $0x14] sm:$0xf]
        %v266 = vld [vmem:[#allocation5 + $0x18] sm:$0xf]
        %v267 = vld [vmem:[#allocation5 + $0x1c] sm:$0xf]
        %v268 = vld [vmem:[#allocation5 + $0x20] sm:$0xf]
        %v269 = vld [vmem:[#allocation5 + $0x24] sm:$0xf]
        %v270 = vld [vmem:[#allocation5 + $0x28] sm:$0xf]
        %v271 = vld [vmem:[#allocation5 + $0x2c] sm:$0xf]
        %v272 = vld [vmem:[#allocation5 + $0x30] sm:$0xf]
        %v273 = vld [vmem:[#allocation5 + $0x34] sm:$0xf]
        %v274 = vld [vmem:[#allocation5 + $0x38] sm:$0xf]
        %v275 = vld [vmem:[#allocation5 + $0x3c] sm:$0xf]
        %v276 = vld [vmem:[%s2] sm:$0x1]
        %v278 = vlaneseq
        %v279 = vshrl.u32 %v278, 7
        %v280 = vsub.s32 0, %v279
        %v281 = vrot.slane %v276, %v280
        %v299 = vunpack.c.l.b16 %v260
        %v300 = vunpack.c.l.b16 %v261
        %v301 = vunpack.c.l.b16 %v262
        %v302 = vunpack.c.l.b16 %v263
        %v303 = vunpack.c.l.b16 %v264
        %v304 = vunpack.c.l.b16 %v265
        %v305 = vunpack.c.l.b16 %v266
        %v306 = vunpack.c.l.b16 %v267
        %v307 = vunpack.c.l.b16 %v268
        %v308 = vunpack.c.l.b16 %v269
        %v309 = vunpack.c.l.b16 %v270
        %v310 = vunpack.c.l.b16 %v271
        %v311 = vunpack.c.l.b16 %v272
        %v312 = vunpack.c.l.b16 %v273
        %v313 = vunpack.c.l.b16 %v274
        %v314 = vunpack.c.l.b16 %v275
        %v315 = vpack.c.b16 %v300, %v299
        %v316 = vpack.c.b16 %v302, %v301
        %v317 = vpack.c.b16 %v304, %v303
        %v318 = vpack.c.b16 %v306, %v305
        %v319 = vpack.c.b16 %v308, %v307
        %v320 = vpack.c.b16 %v310, %v309
        %v321 = vpack.c.b16 %v312, %v311
        %v322 = vpack.c.b16 %v314, %v313
        %331 = vmatprep.subr.bf16.mxu0 0
        %332 = vmatpush1.bf16.xpose.msra.mxu0 %v322
        %333 = vmatprep.subr.bf16.mxu0 0
        %334 = vmatpush1.bf16.xpose.msra.mxu0 %v321
        %335 = vmatprep.subr.bf16.mxu0 0
        %336 = vmatpush1.bf16.xpose.msra.mxu0 %v320
        %337 = vmatprep.subr.bf16.mxu0 0
        %338 = vmatpush1.bf16.xpose.msra.mxu0 %v319
        %339 = vmatprep.subr.bf16.mxu0 0
        %340 = vmatpush1.bf16.xpose.msra.mxu0 %v318
        %341 = vmatprep.subr.bf16.mxu0 0
        %342 = vmatpush1.bf16.xpose.msra.mxu0 %v317
        %343 = vmatprep.subr.bf16.mxu0 0
        %344 = vmatpush1.bf16.xpose.msra.mxu0 %v316
        %345 = vmatprep.subr.bf16.mxu0 0
        %346 = vmatpush1.bf16.xpose.msra.mxu0 %v315
        %347 = vmatprep.subr.bf16.mxu0 0
        %348 = vmatpush2.bf16.xpose.msra.mxu0 0
        %349 = vmatprep.subr.bf16.mxu0 0
        %350 = vmatpush2.bf16.xpose.msra.mxu0 0
        %351 = vmatprep.subr.bf16.mxu0 0
        %352 = vmatpush2.bf16.xpose.msra.mxu0 0
        %353 = vmatprep.subr.bf16.mxu0 0
        %354 = vmatpush2.bf16.xpose.msra.mxu0 0
        %355 = vmatprep.subr.bf16.mxu0 0
        %356 = vmatpush2.bf16.xpose.msra.mxu0 0
        %357 = vmatprep.subr.bf16.mxu0 0
        %358 = vmatpush2.bf16.xpose.msra.mxu0 0
        %359 = vmatprep.subr.bf16.mxu0 0
        %360 = vmatpush2.bf16.xpose.msra.mxu0 0
        %361 = vmatprep.subr.bf16.mxu0 0
        %362 = vmatpush2.bf16.xpose.msra.mxu0 0
        %363 = vmatprep.mubr.bf16.mxu0 0
        %364 = vmatmul.mubr.bf16.gmra.mxu0 %v259
        %v365 = vpop.f32.mrf.mxu0
        %v366 = vadd.f32 %v281, %v365
        %v367 = vpop.f32.mrf.mxu0
        %v368 = vpop.f32.mrf.mxu0
        %v369 = vpop.f32.mrf.mxu0
        %370 = vdwg.mxu0
        %v371 = vtanh.pop %v366
        %v372 = vld [vmem:[%s3] sm:$0x1]
        %v374 = vlaneseq
        %v375 = vshrl.u32 %v374, 7
        %v376 = vsub.s32 0, %v375
        %v377 = vrot.slane %v372, %v376
        %v379 = vmul.f32 %v371, %v377
        %380 = vadd.xlane.f32.xlu0 %v379
        %v381 = vpop.xlane.xlu0 %380
        %s382 = sld [smem:[#allocation2]]
        %v383 = vstv %s382
        %v384 = vadd.f32 %v381, %v383
        %vm385 = vcmask 7168
        %386 = vst.msk [vmem:[%s256] sm:$0xff] %vm385, %v384
        %p387 = scmp.lt.s32.totalorder %s21, 2
        %s388 = scalar_select %p387, %s21, 2
        %s389 = smul.addr %s388, 8
        %s390 = scalar_lea.vmem %s5, %s389
        // Predicated region
        $region49: #{tpu_custom_call.1} parent=39 // pred_check
          %p391 = pneg %p149
        $region50: #{tpu_custom_call.1} parent=39 // pred_check_branch
          %393 = sbr.rel (%p391) target = $region52
        $region51: #{tpu_custom_call.1} parent=39 // pred_region
          _
        $region52: #{tpu_custom_call.1} parent=39 // pred_fallthru
          _
      $region40: #{tpu_custom_call.1} parent=5 // pred_fallthru
        _
      %p394 = scmp.le.s32.totalorder 2, %s16
      // Predicated region
      $region53: #{tpu_custom_call.1} parent=5 // pred_check
        %p395 = pneg %p394
      $region54: #{tpu_custom_call.1} parent=5 // pred_check_branch
        %397 = sbr.rel (%p395) target = $region56
      $region55: #{tpu_custom_call.1} parent=5 // pred_region
        %s398 = ssub.s32 %s16, 2
        // Predicated region
        $region57: #{tpu_custom_call.1} parent=55 // pred_check
          %p399 = pneg %p155
        $region58: #{tpu_custom_call.1} parent=55 // pred_check_branch
          %401 = sbr.rel (%p399) target = $region60
        $region59: #{tpu_custom_call.1} parent=55 // pred_region
          %p402 = scmp.lt.s32.totalorder %s22, 2
          %s403 = scalar_select %p402, %s22, 2
          %s404 = smul.addr %s403, 8
          %s405 = scalar_lea.vmem %s5, %s404
        $region60: #{tpu_custom_call.1} parent=55 // pred_fallthru
          _
      $region56: #{tpu_custom_call.1} parent=5 // pred_fallthru
        _
    $region6: #{tpu_custom_call.1} parent=1 // loop_footer
      %s20 = sadd.s32 1, %s16
    $region7: #{tpu_custom_call.1} parent=1 // loop_footer_branch
      %15 = sbr.rel target = $region3
    $region8: #{tpu_custom_call.1} parent=1 // loop_exit
      _
    %406 = vsyncpa [#allocation4], 1
    %s407 = scalar_lea.sflag [#allocation4], 1
    %408 = vsyncpa %s407, 1
    %409 = vsyncpa [#allocation6], 1

</llo_original>
